<compile_context>
chip_gen: v7x
topology: tpu7x:2x2x1
jax: 0.10.0
libtpu: 0.0.40
codegen_flags: <defaults>
</compile_context>

<pallas_src>
import math
from functools import partial

import jax
import jax.numpy as jnp
from jax.experimental import pallas as pl
from jax.experimental.pallas import tpu as pltpu

EPS = 1e-4  # LN eps from the reference module


def _layer_norm(x, eps=EPS):
    # gamma = ones, beta = zeros in the reference LN, so the affine is identity.
    mean = jnp.mean(x, axis=-1, keepdims=True)
    var = jnp.mean((x - mean) ** 2, axis=-1, keepdims=True)
    return (x - mean) * jax.lax.rsqrt(var + eps)  # rsqrt: single EUP op


# ---------------------------------------------------------------------------
# Kernel A: pre-norm + fused Q/K/V projections (full-width bf16 matmuls)
# ---------------------------------------------------------------------------
def ln_qkv_kernel(x_ref, wq_ref, wk_ref, wv_ref, q_ref, k_ref, v_ref, *, scale):
    x = x_ref[...].astype(jnp.float32)                       # (TQ, D)
    xn = _layer_norm(x).astype(jnp.bfloat16)
    q = jnp.dot(xn, wq_ref[...], preferred_element_type=jnp.float32) * scale
    k = jnp.dot(xn, wk_ref[...], preferred_element_type=jnp.float32)
    v = jnp.dot(xn, wv_ref[...], preferred_element_type=jnp.float32)
    q_ref[...] = q.astype(q_ref.dtype)                       # bf16 out (matmul operand only)
    k_ref[...] = k.astype(k_ref.dtype)
    v_ref[...] = v.astype(v_ref.dtype)


# ---------------------------------------------------------------------------
# Kernel B: batched-head attention + output projection + FFN (+ residuals)
# ---------------------------------------------------------------------------
def attn_ffn_kernel(x_ref, q_ref, k_ref, v_ref, wo_ref, bo_ref,
                    w1_ref, b1_ref, w2_ref, b2_ref, o_ref,
                    *, seq_len, q_tile, causal):
    x = x_ref[...].astype(jnp.float32)                       # (TQ, D)
    qh = q_ref[...]                                          # (H, TQ, hd) bf16, pre-scaled
    kh = k_ref[...]                                          # (H, S,  hd) bf16
    vh = v_ref[...]                                          # (H, S,  hd) bf16

    # Scores for all heads at once: (H, TQ, S); f32 accumulation on the MXU.
    scores = jnp.einsum('hqd,hkd->hqk', qh, kh,
                        preferred_element_type=jnp.float32)

    if causal:
        # Additive causal mask for this q-tile only; finite value (no NaN hazard).
        q0 = pl.program_id(1) * q_tile
        row = jax.lax.broadcasted_iota(jnp.int32, (q_tile, seq_len), 0) + q0
        col = jax.lax.broadcasted_iota(jnp.int32, (q_tile, seq_len), 1)
        bias = jnp.where(col > row, -1e30, 0.0).astype(jnp.float32)
        scores = scores + bias[None, :, :]

    m = jnp.max(scores, axis=-1, keepdims=True)              # (H, TQ, 1)
    p = jnp.exp(scores - m)
    denom = jnp.sum(p, axis=-1, keepdims=True)

    # Unnormalized context; fold 1/denom in afterwards (fewer multiplies,
    # approximate reciprocal runs on the EUP).
    ctx = jnp.einsum('hqk,hkd->hqd', p.astype(jnp.bfloat16), vh,
                     preferred_element_type=jnp.float32)     # (H, TQ, hd)
    ctx = ctx * pl.reciprocal(denom, approx=True)

    # Output projection with head-major Wo (H, hd, D): batched matmul + sum over
    # heads -- merges heads without any in-kernel transpose / concat.
    oproj = jnp.einsum('hqd,hdm->hqm', ctx.astype(jnp.bfloat16), wo_ref[...],
                       preferred_element_type=jnp.float32)   # (H, TQ, D)
    attn = jnp.sum(oproj, axis=0) + bo_ref[...]
    x = x + attn                                             # residual 1

    # ----- pre-norm feed-forward -----
    xn2 = _layer_norm(x)
    h1 = jnp.dot(xn2.astype(jnp.bfloat16), w1_ref[...],
                 preferred_element_type=jnp.float32) + b1_ref[...]
    h1 = jnp.maximum(h1, 0.0)                                # ReLU (f32)
    ff = jnp.dot(h1.astype(jnp.bfloat16), w2_ref[...],
                 preferred_element_type=jnp.float32) + b2_ref[...]

    o_ref[...] = (x + ff).astype(o_ref.dtype)                # residual 2


def transformer_block(x, p, *, heads, causal=True, q_tile=256):
    # q_tile: raise to 512-1024 on v6e (128 MiB VMEM), keep tighter on v7x (64 MiB).
    B, S, D = x.shape
    assert D % heads == 0
    hd = D // heads
    F = p["w1"].shape[1]
    tq = min(q_tile, S)
    if S % tq != 0:
        tq = S
    nq = S // tq

    def winv(shape):  # grid-invariant (weight) block: whole array every step
        return pl.BlockSpec(shape, lambda b, qi: (0,) * len(shape))

    act_spec = pl.BlockSpec((None, tq, D), lambda b, qi: (b, qi, 0))
    par2 = pltpu.CompilerParams(dimension_semantics=("parallel", "parallel"))

    # --- kernel A: LN + Q/K/V projections (scale folded into q) ---
    scale = 1.0 / math.sqrt(hd)
    q, k, v = pl.pallas_call(
        partial(ln_qkv_kernel, scale=scale),
        out_shape=tuple(jax.ShapeDtypeStruct((B, S, D), jnp.bfloat16)
                        for _ in range(3)),
        grid=(B, nq),
        in_specs=[act_spec, winv((D, D)), winv((D, D)), winv((D, D))],
        out_specs=(act_spec, act_spec, act_spec),
        compiler_params=par2,
    )(x, p["wq"], p["wk"], p["wv"])

    # Head split in plain JAX (pure layout plumbing, kept out of the kernels).
    def split_heads(t):                                      # (B,S,D) -> (B,H,S,hd)
        return t.reshape(B, S, heads, hd).transpose(0, 2, 1, 3)

    qh, kh, vh = split_heads(q), split_heads(k), split_heads(v)

    # --- kernel B: batched-head attention + out-proj + FFN (+ residuals) ---
    kern = partial(attn_ffn_kernel, seq_len=S, q_tile=tq, causal=causal)
    return pl.pallas_call(
        kern,
        out_shape=jax.ShapeDtypeStruct((B, S, D), x.dtype),
        grid=(B, nq),
        in_specs=[
            act_spec,                                                        # x tile
            pl.BlockSpec((None, heads, tq, hd), lambda b, qi: (b, 0, qi, 0)),  # q tile
            pl.BlockSpec((None, heads, S, hd), lambda b, qi: (b, 0, 0, 0)),    # k (full S)
            pl.BlockSpec((None, heads, S, hd), lambda b, qi: (b, 0, 0, 0)),    # v (full S)
            winv((heads, hd, D)), winv((1, D)),                              # Wo3, bo
            winv((D, F)), winv((1, F)),                                      # W1, b1
            winv((F, D)), winv((1, D)),                                      # W2, b2
        ],
        out_specs=act_spec,
        compiler_params=par2,
    )(x, qh, kh, vh, p["wo3"], p["bo"], p["w1"], p["b1"], p["w2"], p["b2"])


# ---------------------------------------------------------------------------
# Final LayerNorm + output head on the last token, tiled over the vocab dim
# ---------------------------------------------------------------------------
def head_kernel(x_ref, wh_ref, bh_ref, o_ref):
    x = x_ref[...].astype(jnp.float32)                       # (B, D)
    xn = _layer_norm(x).astype(jnp.bfloat16)                 # self.norm (final LN)
    o_ref[...] = (jnp.dot(xn, wh_ref[...], preferred_element_type=jnp.float32)
                  + bh_ref[...]).astype(o_ref.dtype)


def head_call(x_last, wh, bh, *, v_tile=2048):
    B, D = x_last.shape
    V = wh.shape[1]
    tv = min(v_tile, V)
    if V % tv != 0:
        tv = V  # TODO(synk): mask a ragged final vocab tile instead of falling back
    return pl.pallas_call(
        head_kernel,
        out_shape=jax.ShapeDtypeStruct((B, V), jnp.float32),
        grid=(V // tv,),
        in_specs=[
            pl.BlockSpec((B, D), lambda v: (0, 0)),
            pl.BlockSpec((D, tv), lambda v: (0, v)),
            pl.BlockSpec((1, tv), lambda v: (0, v)),
        ],
        out_specs=pl.BlockSpec((B, tv), lambda v: (0, v)),
        compiler_params=pltpu.CompilerParams(dimension_semantics=("parallel",)),
    )(x_last, wh, bh)


# ---------------------------------------------------------------------------
# Parameter init (deterministic, synthetic) and full forward
# ---------------------------------------------------------------------------
def _linear_init(key, fan_in, fan_out, bias=True):
    kw, kb = jax.random.split(key)
    bound = 1.0 / math.sqrt(fan_in)
    w = jax.random.uniform(kw, (fan_in, fan_out), jnp.float32, -bound, bound)
    if not bias:
        return w, None
    b = jax.random.uniform(kb, (1, fan_out), jnp.float32, -bound, bound)
    return w, b


def sinusoidal_pe(seq_len, model_dim):
    positions = jnp.arange(seq_len, dtype=jnp.float32)[:, None]
    div_term = jnp.exp(jnp.arange(0, model_dim, 2, dtype=jnp.float32)
                       * (-math.log(10000.0) / model_dim))
    pe = jnp.zeros((seq_len, model_dim), jnp.float32)
    pe = pe.at[:, 0::2].set(jnp.sin(positions * div_term))
    pe = pe.at[:, 1::2].set(jnp.cos(positions * div_term))
    return pe


def init_params(key, *, n_blocks, seq_len, model_dim, ff_dim, v_size, heads):
    D, F = model_dim, ff_dim
    hd = D // heads
    bf16 = jnp.bfloat16
    keys = list(jax.random.split(key, 7 * n_blocks + 2))
    ki = iter(keys)

    blocks = []
    for _ in range(n_blocks):
        wq, _ = _linear_init(next(ki), D, D, bias=False)
        wk, _ = _linear_init(next(ki), D, D, bias=False)
        wv, _ = _linear_init(next(ki), D, D, bias=False)
        wo, bo = _linear_init(next(ki), D, D)
        w1, b1 = _linear_init(next(ki), D, F)
        w2, b2 = _linear_init(next(ki), F, D)
        next(ki)  # spare key, keeps split count stable
        blocks.append(dict(
            wq=wq.astype(bf16), wk=wk.astype(bf16), wv=wv.astype(bf16),
            # head-major output projection: (H, head_dim, D), stored bf16 in HBM
            wo3=wo.reshape(heads, hd, D).astype(bf16), bo=bo,
            w1=w1.astype(bf16), b1=b1, w2=w2.astype(bf16), b2=b2))

    embedding = jax.random.normal(next(ki), (seq_len, D), jnp.float32)
    wh, bh = _linear_init(next(ki), D, v_size)
    return dict(blocks=blocks, embedding=embedding,
                pe=sinusoidal_pe(seq_len, D), wh=wh.astype(bf16), bh=bh)


def agt_forward(tokens, params, *, heads):
    # Glue (plain JAX): embedding gather + sinusoidal positional encoding.
    x = params["embedding"][tokens]                          # (B, S, D) f32
    x = x + params["pe"][None, : x.shape[1], :]
    for blk in params["blocks"]:
        x = transformer_block(x, blk, heads=heads, causal=True)
    x_last = x[:, -1, :]                                     # last token
    return head_call(x_last, params["wh"], params["bh"])     # (B, v_size)


if __name__ == "__main__":
    B, S, D, H, F, V, NB = 2, 8, 32, 4, 64, 16, 2

    key = jax.random.PRNGKey(0)
    k_params, k_tok = jax.random.split(key)
    params = init_params(k_params, n_blocks=NB, seq_len=S, model_dim=D,
                         ff_dim=F, v_size=V, heads=H)
    tokens = jax.random.randint(k_tok, (B, S), 0, S, dtype=jnp.int32)

    logits = agt_forward(tokens, params, heads=H)
    jax.block_until_ready(logits)
    assert logits.shape == (B, V) and logits.dtype == jnp.float32
    assert bool(jnp.all(jnp.isfinite(logits)))
    print("KERNEL_OK")
</pallas_src>

<mosaic_0001>
module attributes {stable_mosaic.version = 11 : i64} {
  func.func @ln_qkv_kernel(%arg0: i32, %arg1: i32, %arg2: memref<1x8x32xf32, #tpu.memory_space<vmem>>, %arg3: memref<32x32xbf16, #tpu.memory_space<vmem>>, %arg4: memref<32x32xbf16, #tpu.memory_space<vmem>>, %arg5: memref<32x32xbf16, #tpu.memory_space<vmem>>, %arg6: memref<1x8x32xbf16, #tpu.memory_space<vmem>>, %arg7: memref<1x8x32xbf16, #tpu.memory_space<vmem>>, %arg8: memref<1x8x32xbf16, #tpu.memory_space<vmem>>) attributes {dimension_semantics = [#tpu.dimension_semantics<parallel>, #tpu.dimension_semantics<parallel>], iteration_bounds = array<i64: 2, 1>, scalar_prefetch = 0 : i64, scratch_operands = 0 : i64, tpu.core_type = #tpu.core_type<tc>, window_params = [{transform_indices = @transform_0, window_bounds = array<i64: 1, 8, 32>}, {pipeline_mode = #tpu.pipeline_mode<synchronous>, transform_indices = @transform_1, window_bounds = array<i64: 32, 32>}, {pipeline_mode = #tpu.pipeline_mode<synchronous>, transform_indices = @transform_2, window_bounds = array<i64: 32, 32>}, {pipeline_mode = #tpu.pipeline_mode<synchronous>, transform_indices = @transform_3, window_bounds = array<i64: 32, 32>}, {transform_indices = @transform_4, window_bounds = array<i64: 1, 8, 32>}, {transform_indices = @transform_5, window_bounds = array<i64: 1, 8, 32>}, {transform_indices = @transform_6, window_bounds = array<i64: 1, 8, 32>}]} {
    %c0 = arith.constant 0 : index
    %c0_0 = arith.constant 0 : index
    %c0_1 = arith.constant 0 : index
    %0 = vector.load %arg2[%c0, %c0_0, %c0_1] : memref<1x8x32xf32, #tpu.memory_space<vmem>>, vector<1x8x32xf32>
    %1 = vector.shape_cast %0 : vector<1x8x32xf32> to vector<8x32xf32>
    %cst = arith.constant dense<0.000000e+00> : vector<8xf32>
    %2 = vector.multi_reduction <add>, %1, %cst [1] : vector<8x32xf32> to vector<8xf32>
    %3 = vector.shape_cast %2 : vector<8xf32> to vector<8x1xf32>
    %cst_2 = arith.constant 3.200000e+01 : f32
    %4 = vector.broadcast %cst_2 : f32 to vector<8x1xf32>
    %5 = arith.divf %3, %4 : vector<8x1xf32>
    %6 = vector.broadcast %5 : vector<8x1xf32> to vector<8x32xf32>
    %7 = arith.subf %1, %6 : vector<8x32xf32>
    %8 = arith.mulf %7, %7 : vector<8x32xf32>
    %cst_3 = arith.constant dense<0.000000e+00> : vector<8xf32>
    %9 = vector.multi_reduction <add>, %8, %cst_3 [1] : vector<8x32xf32> to vector<8xf32>
    %10 = vector.shape_cast %9 : vector<8xf32> to vector<8x1xf32>
    %cst_4 = arith.constant 3.200000e+01 : f32
    %11 = vector.broadcast %cst_4 : f32 to vector<8x1xf32>
    %12 = arith.divf %10, %11 : vector<8x1xf32>
    %13 = vector.broadcast %5 : vector<8x1xf32> to vector<8x32xf32>
    %14 = arith.subf %1, %13 : vector<8x32xf32>
    %cst_5 = arith.constant 9.99999974E-5 : f32
    %15 = vector.broadcast %cst_5 : f32 to vector<8x1xf32>
    %16 = arith.addf %12, %15 : vector<8x1xf32>
    %17 = math.rsqrt %16 : vector<8x1xf32>
    %18 = vector.broadcast %17 : vector<8x1xf32> to vector<8x32xf32>
    %19 = arith.mulf %14, %18 : vector<8x32xf32>
    %20 = arith.truncf %19 : vector<8x32xf32> to vector<8x32xbf16>
    %c0_6 = arith.constant 0 : index
    %c0_7 = arith.constant 0 : index
    %21 = vector.load %arg3[%c0_6, %c0_7] : memref<32x32xbf16, #tpu.memory_space<vmem>>, vector<32x32xbf16>
    %cst_8 = arith.constant dense<0.000000e+00> : vector<8x32xf32>
    %22 = tpu.matmul %20, %21, %cst_8 {dimension_numbers = #tpu.dot_dimension_numbers<[1], [0], [0], [1], [0, 0, 1, 1], [], []>} : vector<8x32xbf16>, vector<32x32xbf16>, vector<8x32xf32> -> vector<8x32xf32>
    %cst_9 = arith.constant 0.353553385 : f32
    %23 = vector.broadcast %cst_9 : f32 to vector<8x32xf32>
    %24 = arith.mulf %22, %23 : vector<8x32xf32>
    %c0_10 = arith.constant 0 : index
    %c0_11 = arith.constant 0 : index
    %25 = vector.load %arg4[%c0_10, %c0_11] : memref<32x32xbf16, #tpu.memory_space<vmem>>, vector<32x32xbf16>
    %cst_12 = arith.constant dense<0.000000e+00> : vector<8x32xf32>
    %26 = tpu.matmul %20, %25, %cst_12 {dimension_numbers = #tpu.dot_dimension_numbers<[1], [0], [0], [1], [0, 0, 1, 1], [], []>} : vector<8x32xbf16>, vector<32x32xbf16>, vector<8x32xf32> -> vector<8x32xf32>
    %c0_13 = arith.constant 0 : index
    %c0_14 = arith.constant 0 : index
    %27 = vector.load %arg5[%c0_13, %c0_14] : memref<32x32xbf16, #tpu.memory_space<vmem>>, vector<32x32xbf16>
    %cst_15 = arith.constant dense<0.000000e+00> : vector<8x32xf32>
    %28 = tpu.matmul %20, %27, %cst_15 {dimension_numbers = #tpu.dot_dimension_numbers<[1], [0], [0], [1], [0, 0, 1, 1], [], []>} : vector<8x32xbf16>, vector<32x32xbf16>, vector<8x32xf32> -> vector<8x32xf32>
    %29 = arith.truncf %24 : vector<8x32xf32> to vector<8x32xbf16>
    %c0_16 = arith.constant 0 : index
    %c0_17 = arith.constant 0 : index
    %c0_18 = arith.constant 0 : index
    %30 = vector.load %arg6[%c0_16, %c0_17, %c0_18] : memref<1x8x32xbf16, #tpu.memory_space<vmem>>, vector<1x8x32xbf16>
    %31 = vector.shape_cast %30 : vector<1x8x32xbf16> to vector<8x32xbf16>
    %32 = vector.shape_cast %29 : vector<8x32xbf16> to vector<1x8x32xbf16>
    tpu.vector_store %arg6[%c0_16, %c0_17, %c0_18], %32 {strides = array<i32>} : memref<1x8x32xbf16, #tpu.memory_space<vmem>>, vector<1x8x32xbf16>,
    %33 = arith.truncf %26 : vector<8x32xf32> to vector<8x32xbf16>
    %c0_19 = arith.constant 0 : index
    %c0_20 = arith.constant 0 : index
    %c0_21 = arith.constant 0 : index
    %34 = vector.load %arg7[%c0_19, %c0_20, %c0_21] : memref<1x8x32xbf16, #tpu.memory_space<vmem>>, vector<1x8x32xbf16>
    %35 = vector.shape_cast %34 : vector<1x8x32xbf16> to vector<8x32xbf16>
    %36 = vector.shape_cast %33 : vector<8x32xbf16> to vector<1x8x32xbf16>
    tpu.vector_store %arg7[%c0_19, %c0_20, %c0_21], %36 {strides = array<i32>} : memref<1x8x32xbf16, #tpu.memory_space<vmem>>, vector<1x8x32xbf16>,
    %37 = arith.truncf %28 : vector<8x32xf32> to vector<8x32xbf16>
    %c0_22 = arith.constant 0 : index
    %c0_23 = arith.constant 0 : index
    %c0_24 = arith.constant 0 : index
    %38 = vector.load %arg8[%c0_22, %c0_23, %c0_24] : memref<1x8x32xbf16, #tpu.memory_space<vmem>>, vector<1x8x32xbf16>
    %39 = vector.shape_cast %38 : vector<1x8x32xbf16> to vector<8x32xbf16>
    %40 = vector.shape_cast %37 : vector<8x32xbf16> to vector<1x8x32xbf16>
    tpu.vector_store %arg8[%c0_22, %c0_23, %c0_24], %40 {strides = array<i32>} : memref<1x8x32xbf16, #tpu.memory_space<vmem>>, vector<1x8x32xbf16>,
    return
  }
  func.func @transform_0(%arg0: i32, %arg1: i32) -> (i32, i32, i32) {
    %c0_i32 = arith.constant 0 : i32
    %c0_i32_0 = arith.constant 0 : i32
    return %arg0, %arg1, %c0_i32 : i32, i32, i32
  }
  func.func @transform_1(%arg0: i32, %arg1: i32) -> (i32, i32) {
    %c0_i32 = arith.constant 0 : i32
    %c0_i32_0 = arith.constant 0 : i32
    %c0_i32_1 = arith.constant 0 : i32
    return %c0_i32, %c0_i32_0 : i32, i32
  }
  func.func @transform_2(%arg0: i32, %arg1: i32) -> (i32, i32) {
    %c0_i32 = arith.constant 0 : i32
    %c0_i32_0 = arith.constant 0 : i32
    %c0_i32_1 = arith.constant 0 : i32
    return %c0_i32, %c0_i32_0 : i32, i32
  }
  func.func @transform_3(%arg0: i32, %arg1: i32) -> (i32, i32) {
    %c0_i32 = arith.constant 0 : i32
    %c0_i32_0 = arith.constant 0 : i32
    %c0_i32_1 = arith.constant 0 : i32
    return %c0_i32, %c0_i32_0 : i32, i32
  }
  func.func @transform_4(%arg0: i32, %arg1: i32) -> (i32, i32, i32) {
    %c0_i32 = arith.constant 0 : i32
    %c0_i32_0 = arith.constant 0 : i32
    return %arg0, %arg1, %c0_i32 : i32, i32, i32
  }
  func.func @transform_5(%arg0: i32, %arg1: i32) -> (i32, i32, i32) {
    %c0_i32 = arith.constant 0 : i32
    %c0_i32_0 = arith.constant 0 : i32
    return %arg0, %arg1, %c0_i32 : i32, i32, i32
  }
  func.func @transform_6(%arg0: i32, %arg1: i32) -> (i32, i32, i32) {
    %c0_i32 = arith.constant 0 : i32
    %c0_i32_0 = arith.constant 0 : i32
    return %arg0, %arg1, %c0_i32 : i32, i32, i32
  }
}

</mosaic_0001>

<llo_original>
// kernel: tpu_custom_call.1
$region0: #{tpu_custom_call.1}
  #allocation0 [shape = 'u32[]', space=smem, size = 0x4, offset = 0x4, fixed_abs, tag = 'smem constant byte address 0x4 - core index']
  #allocation1 [shape = 'u32[144,128]{1,0:T(1,128)}', space=vmem, size = 0x12000, scoped, tag = 'internal scratch']
  %s0 = inlined_call_operand.hbm [shape: f32[2,8,32], index: 0, kind: input, shape index: {}]
  %s1 = inlined_call_operand.hbm [shape: bf16[32,32], index: 1, kind: input, shape index: {}]
  %s2 = inlined_call_operand.hbm [shape: bf16[32,32], index: 2, kind: input, shape index: {}]
  %s3 = inlined_call_operand.hbm [shape: bf16[32,32], index: 3, kind: input, shape index: {}]
  %s4 = inlined_call_operand.hbm [shape: bf16[2,8,32], index: 4, kind: output, shape index: {0}]
  %s5 = inlined_call_operand.hbm [shape: bf16[2,8,32], index: 5, kind: output, shape index: {1}]
  %s6 = inlined_call_operand.hbm [shape: bf16[2,8,32], index: 6, kind: output, shape index: {2}]
  %7 = xla_tuple %s4, %s5, %s6
  %s8 = sld [smem:[#allocation0]]
  $region81: #{tpu_custom_call.1} parent=0
    _
  %s10 = ssub.s32 1, %s8
  %s11 = scalar_select 0, %s10, %s8
  $region1: #{tpu_custom_call.1} parent=0
    #allocation2 [shape = 'u8[8192]{0}', space=vmem, size = 0x2000, scoped, tag = 'input window, operand 0']
    #allocation3 [shape = 's32[2]{0}', space=sflag, size = 0x8, scoped, tag = 'scoped memory for tpu_custom_call.1']
    #allocation4 [shape = 's32[2]{0}', space=sflag, size = 0x8, scoped, tag = 'scoped memory for tpu_custom_call.1']
    #allocation5 [shape = 'u8[8192]{0}', space=vmem, size = 0x2000, scoped, tag = 'input window, operand 1, single buffered']
    #allocation6 [shape = 's32[1]{0}', space=sflag, size = 0x4, scoped, tag = 'scoped memory for tpu_custom_call.1']
    #allocation7 [shape = 'u8[8192]{0}', space=vmem, size = 0x2000, scoped, tag = 'input window, operand 2, single buffered']
    #allocation8 [shape = 'u8[8192]{0}', space=vmem, size = 0x2000, scoped, tag = 'input window, operand 3, single buffered']
    #allocation9 [shape = 's32[1]{0}', space=sflag, size = 0x4, scoped, tag = 'scoped memory for tpu_custom_call.1']
    #allocation10 [shape = 'u8[4096]{0}', space=vmem, size = 0x1000, scoped, tag = 'output window, operand 0']
    #allocation11 [shape = 'u8[4096]{0}', space=vmem, size = 0x1000, scoped, tag = 'output window, operand 1']
    #allocation12 [shape = 's32[2]{0}', space=sflag, size = 0x8, scoped, tag = 'scoped memory for tpu_custom_call.1']
    #allocation13 [shape = 'u8[4096]{0}', space=vmem, size = 0x1000, scoped, tag = 'output window, operand 2']
    %12 = vsyncpa [#allocation3], 0
    %s13 = scalar_lea.sflag [#allocation3], 1
    %14 = vsyncpa %s13, 0
    %15 = vsyncpa [#allocation6], 0
    %16 = vsyncpa [#allocation9], 0
    %17 = vsyncpa [#allocation4], 0
    %s18 = scalar_lea.sflag [#allocation4], 1
    %19 = vsyncpa %s18, 0
    %20 = vsyncpa [#allocation12], 0
    %s21 = scalar_lea.sflag [#allocation12], 1
    %22 = vsyncpa %s21, 0
    loop: start=0, step=1, limit=4
    $region2: #{tpu_custom_call.1} parent=1 // loop_pre_header
      _
    $region3: #{tpu_custom_call.1} parent=1 // loop_header
      %s24 = sphi 0, %s28
      %p25 = scmp.ge.s32.totalorder %s24, 4
      %s31 = sphi 0, %s43
      %s32 = sphi 0, %s39
      %s33 = sphi 0, %s31
      %s34 = sphi 0, %s32
      %s35 = sphi 0, %s33
      %s36 = sphi 0, %s34
      %s48 = sphi 0, %s50
      %s51 = sphi 0, %s48
      %s52 = sphi 0, %s51
      %s68 = sphi 0, %s52
      %s72 = sphi 0, %s72
      %s74 = sphi 0, %s72
      %s75 = sphi 0, %s74
      %s89 = sphi 0, %s75
      %s93 = sphi 0, %s93
      %s95 = sphi 0, %s93
      %s96 = sphi 0, %s95
      %s110 = sphi 0, %s96
      %s114 = sphi 0, %s114
      %s116 = sphi 0, %s114
      %s117 = sphi 0, %s116
      %s131 = sphi 0, %s117
      %s139 = sphi 0, %s141
      %s142 = sphi 0, %s139
      %s143 = sphi 0, %s142
      %s159 = sphi 0, %s143
      %s167 = sphi 0, %s169
      %s170 = sphi 0, %s167
      %s171 = sphi 0, %s170
      %s187 = sphi 0, %s171
      %s195 = sphi 0, %s197
      %s198 = sphi 0, %s195
      %s199 = sphi 0, %s198
      %s215 = sphi 0, %s199
    $region4: #{tpu_custom_call.1} parent=1 // loop_header_branch
      %27 = sbr.rel (%p25) target = $region8
    $region5: #{tpu_custom_call.1} parent=1 // loop_body
      %s29 = ssub.s32 %s24, 1
      %s30 = ssub.s32 %s24, 2
      %s37 = sadd.s32 1, %s32
      %p38 = scmp.ge.s32.totalorder %s37, 1
      %s39 = scalar_select %p38, 0, %s37
      %s40 = sadd.s32 1, %s31
      %s41 = scalar_select %p38, %s40, %s31
      %p42 = scmp.ge.s32.totalorder %s41, 2
      %s43 = scalar_select %p42, 0, %s41
      %s44 = ssub.s32 %s31, %s43
      %s45 = ssub.s32 %s32, %s39
      %s46 = sor.u32 %s44, %s45
      %p47 = scmp.eq.s32.totalorder %s46, 0
      %s49 = sadd.s32 %s48, 1
      %s50 = scalar_select %p47, %s48, %s49
      %p53 = pneg %p47
      %p54 = scmp.eq.s32.totalorder %s24, 1
      %p55 = por %p53, %p54
      %p56 = scmp.ne.s32.totalorder %s48, %s51
      %p57 = scmp.eq.s32.totalorder %s24, 0
      %p58 = por %p56, %p57
      %p59 = scmp.ne.s32.totalorder %s48, %s51
      %p60 = scmp.eq.s32.totalorder %s29, 1
      %p61 = por %p59, %p60
      %p62 = scmp.ne.s32.totalorder %s51, %s52
      %p63 = scmp.eq.s32.totalorder %s29, 0
      %p64 = por %p62, %p63
      %p65 = scmp.ne.s32.totalorder %s51, %s52
      %p66 = scmp.eq.s32.totalorder %s30, 1
      %p67 = por %p65, %p66
      %p69 = scmp.ne.s32.totalorder %s52, %s68
      %p70 = scmp.eq.s32.totalorder %s30, 0
      %p71 = por %p69, %p70
      %s73 = sadd.s32 %s72, 1
      %p76 = scmp.eq.s32.totalorder %s24, 1
      %p77 = scmp.ne.s32.totalorder %s72, %s74
      %p78 = scmp.eq.s32.totalorder %s24, 0
      %p79 = por %p77, %p78
      %p80 = scmp.ne.s32.totalorder %s72, %s74
      %p81 = scmp.eq.s32.totalorder %s29, 1
      %p82 = por %p80, %p81
      %p83 = scmp.ne.s32.totalorder %s74, %s75
      %p84 = scmp.eq.s32.totalorder %s29, 0
      %p85 = por %p83, %p84
      %p86 = scmp.ne.s32.totalorder %s74, %s75
      %p87 = scmp.eq.s32.totalorder %s30, 1
      %p88 = por %p86, %p87
      %p90 = scmp.ne.s32.totalorder %s75, %s89
      %p91 = scmp.eq.s32.totalorder %s30, 0
      %p92 = por %p90, %p91
      %s94 = sadd.s32 %s93, 1
      %p97 = scmp.eq.s32.totalorder %s24, 1
      %p98 = scmp.ne.s32.totalorder %s93, %s95
      %p99 = scmp.eq.s32.totalorder %s24, 0
      %p100 = por %p98, %p99
      %p101 = scmp.ne.s32.totalorder %s93, %s95
      %p102 = scmp.eq.s32.totalorder %s29, 1
      %p103 = por %p101, %p102
      %p104 = scmp.ne.s32.totalorder %s95, %s96
      %p105 = scmp.eq.s32.totalorder %s29, 0
      %p106 = por %p104, %p105
      %p107 = scmp.ne.s32.totalorder %s95, %s96
      %p108 = scmp.eq.s32.totalorder %s30, 1
      %p109 = por %p107, %p108
      %p111 = scmp.ne.s32.totalorder %s96, %s110
      %p112 = scmp.eq.s32.totalorder %s30, 0
      %p113 = por %p111, %p112
      %s115 = sadd.s32 %s114, 1
      %p118 = scmp.eq.s32.totalorder %s24, 1
      %p119 = scmp.ne.s32.totalorder %s114, %s116
      %p120 = scmp.eq.s32.totalorder %s24, 0
      %p121 = por %p119, %p120
      %p122 = scmp.ne.s32.totalorder %s114, %s116
      %p123 = scmp.eq.s32.totalorder %s29, 1
      %p124 = por %p122, %p123
      %p125 = scmp.ne.s32.totalorder %s116, %s117
      %p126 = scmp.eq.s32.totalorder %s29, 0
      %p127 = por %p125, %p126
      %p128 = scmp.ne.s32.totalorder %s116, %s117
      %p129 = scmp.eq.s32.totalorder %s30, 1
      %p130 = por %p128, %p129
      %p132 = scmp.ne.s32.totalorder %s117, %s131
      %p133 = scmp.eq.s32.totalorder %s30, 0
      %p134 = por %p132, %p133
      %s135 = ssub.s32 %s31, %s43
      %s136 = ssub.s32 %s32, %s39
      %s137 = sor.u32 %s135, %s136
      %p138 = scmp.eq.s32.totalorder %s137, 0
      %s140 = sadd.s32 %s139, 1
      %s141 = scalar_select %p138, %s139, %s140
      %p144 = pneg %p138
      %p145 = scmp.eq.s32.totalorder %s24, 1
      %p146 = por %p144, %p145
      %p147 = scmp.ne.s32.totalorder %s139, %s142
      %p148 = scmp.eq.s32.totalorder %s24, 0
      %p149 = por %p147, %p148
      %p150 = scmp.ne.s32.totalorder %s139, %s142
      %p151 = scmp.eq.s32.totalorder %s29, 1
      %p152 = por %p150, %p151
      %p153 = scmp.ne.s32.totalorder %s142, %s143
      %p154 = scmp.eq.s32.totalorder %s29, 0
      %p155 = por %p153, %p154
      %p156 = scmp.ne.s32.totalorder %s142, %s143
      %p157 = scmp.eq.s32.totalorder %s30, 1
      %p158 = por %p156, %p157
      %p160 = scmp.ne.s32.totalorder %s143, %s159
      %p161 = scmp.eq.s32.totalorder %s30, 0
      %p162 = por %p160, %p161
      %s163 = ssub.s32 %s31, %s43
      %s164 = ssub.s32 %s32, %s39
      %s165 = sor.u32 %s163, %s164
      %p166 = scmp.eq.s32.totalorder %s165, 0
      %s168 = sadd.s32 %s167, 1
      %s169 = scalar_select %p166, %s167, %s168
      %p172 = pneg %p166
      %p173 = scmp.eq.s32.totalorder %s24, 1
      %p174 = por %p172, %p173
      %p175 = scmp.ne.s32.totalorder %s167, %s170
      %p176 = scmp.eq.s32.totalorder %s24, 0
      %p177 = por %p175, %p176
      %p178 = scmp.ne.s32.totalorder %s167, %s170
      %p179 = scmp.eq.s32.totalorder %s29, 1
      %p180 = por %p178, %p179
      %p181 = scmp.ne.s32.totalorder %s170, %s171
      %p182 = scmp.eq.s32.totalorder %s29, 0
      %p183 = por %p181, %p182
      %p184 = scmp.ne.s32.totalorder %s170, %s171
      %p185 = scmp.eq.s32.totalorder %s30, 1
      %p186 = por %p184, %p185
      %p188 = scmp.ne.s32.totalorder %s171, %s187
      %p189 = scmp.eq.s32.totalorder %s30, 0
      %p190 = por %p188, %p189
      %s191 = ssub.s32 %s31, %s43
      %s192 = ssub.s32 %s32, %s39
      %s193 = sor.u32 %s191, %s192
      %p194 = scmp.eq.s32.totalorder %s193, 0
      %s196 = sadd.s32 %s195, 1
      %s197 = scalar_select %p194, %s195, %s196
      %p200 = pneg %p194
      %p201 = scmp.eq.s32.totalorder %s24, 1
      %p202 = por %p200, %p201
      %p203 = scmp.ne.s32.totalorder %s195, %s198
      %p204 = scmp.eq.s32.totalorder %s24, 0
      %p205 = por %p203, %p204
      %p206 = scmp.ne.s32.totalorder %s195, %s198
      %p207 = scmp.eq.s32.totalorder %s29, 1
      %p208 = por %p206, %p207
      %p209 = scmp.ne.s32.totalorder %s198, %s199
      %p210 = scmp.eq.s32.totalorder %s29, 0
      %p211 = por %p209, %p210
      %p212 = scmp.ne.s32.totalorder %s198, %s199
      %p213 = scmp.eq.s32.totalorder %s30, 1
      %p214 = por %p212, %p213
      %p216 = scmp.ne.s32.totalorder %s199, %s215
      %p217 = scmp.eq.s32.totalorder %s30, 0
      %p218 = por %p216, %p217
      %p219 = scmp.le.s32.totalorder 1, %s24
      %p220 = scmp.lt.s32.totalorder %s24, 3
      %p221 = pnand %p219, %p220
      %p222 = pneg %p221
      // Predicated region
      $region9: #{tpu_custom_call.1} parent=5 // pred_check
        _
      $region10: #{tpu_custom_call.1} parent=5 // pred_check_branch
        %224 = sbr.rel (%p221) target = $region12
      $region11: #{tpu_custom_call.1} parent=5 // pred_region
        %s225 = ssub.s32 %s24, 1
        // Predicated region
        $region13: #{tpu_custom_call.1} parent=11 // pred_check
          %p226 = pneg %p85
        $region14: #{tpu_custom_call.1} parent=11 // pred_check_branch
          %228 = sbr.rel (%p226) target = $region16
        $region15: #{tpu_custom_call.1} parent=11 // pred_region
          %s230 = ssub.s32 256, 256
          %231 = vsyncadd [#allocation6], %s230
          %s232 = sshll.u32 [#allocation5], 4
          %s233 = int_to_ptr.vmem [resolvable:$true] %s232
          %238 = dma.hbm_to_vmem [thread:$0]  %s1, 256, %s233, [#allocation6], 64, 64, 4
        $region16: #{tpu_custom_call.1} parent=11 // pred_fallthru
          _
        // Predicated region
        $region17: #{tpu_custom_call.1} parent=11 // pred_check
          %p239 = pneg %p106
        $region18: #{tpu_custom_call.1} parent=11 // pred_check_branch
          %241 = sbr.rel (%p239) target = $region20
        $region19: #{tpu_custom_call.1} parent=11 // pred_region
          %s243 = ssub.s32 256, 256
          %244 = vsyncadd [#allocation6], %s243
          %s245 = sshll.u32 [#allocation7], 4
          %s246 = int_to_ptr.vmem [resolvable:$true] %s245
          %251 = dma.hbm_to_vmem [thread:$0]  %s2, 256, %s246, [#allocation6], 64, 64, 4
        $region20: #{tpu_custom_call.1} parent=11 // pred_fallthru
          _
        // Predicated region
        $region21: #{tpu_custom_call.1} parent=11 // pred_check
          %p252 = pneg %p127
        $region22: #{tpu_custom_call.1} parent=11 // pred_check_branch
          %254 = sbr.rel (%p252) target = $region24
        $region23: #{tpu_custom_call.1} parent=11 // pred_region
          %s256 = ssub.s32 256, 256
          %257 = vsyncadd [#allocation9], %s256
          %s258 = sshll.u32 [#allocation8], 4
          %s259 = int_to_ptr.vmem [resolvable:$true] %s258
          %264 = dma.hbm_to_vmem [thread:$0]  %s3, 256, %s259, [#allocation9], 64, 64, 4
        $region24: #{tpu_custom_call.1} parent=11 // pred_fallthru
          _
      $region12: #{tpu_custom_call.1} parent=5 // pred_fallthru
        _
      %p265 = scmp.lt.s32.totalorder %s24, 2
      // Predicated region
      $region25: #{tpu_custom_call.1} parent=5 // pred_check
        %p266 = pneg %p265
      $region26: #{tpu_custom_call.1} parent=5 // pred_check_branch
        %268 = sbr.rel (%p266) target = $region28
      $region27: #{tpu_custom_call.1} parent=5 // pred_region
        // Predicated region
        $region29: #{tpu_custom_call.1} parent=27 // pred_check
          %p269 = pneg %p58
        $region30: #{tpu_custom_call.1} parent=27 // pred_check_branch
          %271 = sbr.rel (%p269) target = $region32
        $region31: #{tpu_custom_call.1} parent=27 // pred_region
          %s272 = sand.u32 %s48, 1
          %s273 = scalar_lea.sflag [#allocation3], %s272
          %s274 = sand.u32 %s48, 1
          %s275 = smul.addr %s274, 8
          %s276 = scalar_lea.vmem [#allocation2], %s275
          %s278 = ssub.s32 128, 128
          %279 = vsyncadd %s273, %s278
          %s280 = sadd.s32 %s32, %s31
          %s281 = smul.addr %s280, 128
          %s282 = scalar_lea.hbm %s0, %s281
          %s284 = sshll.u32 %s276, 4
          %s285 = int_to_ptr.vmem [resolvable:$true] %s284
          %287 = dma.hbm_to_vmem [thread:$0]  %s282, 128, %s285, %s273
        $region32: #{tpu_custom_call.1} parent=27 // pred_fallthru
          _
      $region28: #{tpu_custom_call.1} parent=5 // pred_fallthru
        _
      %p288 = scmp.le.s32.totalorder 1, %s24
      %p289 = scmp.lt.s32.totalorder %s24, 3
      %p290 = pnand %p288, %p289
      %p291 = pneg %p290
      // Predicated region
      $region33: #{tpu_custom_call.1} parent=5 // pred_check
        _
      $region34: #{tpu_custom_call.1} parent=5 // pred_check_branch
        %293 = sbr.rel (%p290) target = $region36
      $region35: #{tpu_custom_call.1} parent=5 // pred_region
        %s294 = ssub.s32 %s24, 1
        %s295 = sand.u32 %s51, 1
        %s296 = scalar_lea.sflag [#allocation3], %s295
        %s297 = sand.u32 %s51, 1
        %s298 = smul.addr %s297, 8
        %s299 = scalar_lea.vmem [#allocation2], %s298
        // Predicated region
        $region37: #{tpu_custom_call.1} parent=35 // pred_check
          %p300 = pneg %p64
        $region38: #{tpu_custom_call.1} parent=35 // pred_check_branch
          %302 = sbr.rel (%p300) target = $region40
        $region39: #{tpu_custom_call.1} parent=35 // pred_region
          %303 = dma.done %s296, 128
        $region40: #{tpu_custom_call.1} parent=35 // pred_fallthru
          _
        // Predicated region
        $region41: #{tpu_custom_call.1} parent=35 // pred_check
          %p304 = pneg %p85
        $region42: #{tpu_custom_call.1} parent=35 // pred_check_branch
          %306 = sbr.rel (%p304) target = $region44
        $region43: #{tpu_custom_call.1} parent=35 // pred_region
          %307 = dma.done [#allocation6], 256
        $region44: #{tpu_custom_call.1} parent=35 // pred_fallthru
          _
        // Predicated region
        $region45: #{tpu_custom_call.1} parent=35 // pred_check
          %p308 = pneg %p106
        $region46: #{tpu_custom_call.1} parent=35 // pred_check_branch
          %310 = sbr.rel (%p308) target = $region48
        $region47: #{tpu_custom_call.1} parent=35 // pred_region
          %311 = dma.done [#allocation6], 256
        $region48: #{tpu_custom_call.1} parent=35 // pred_fallthru
          _
        // Predicated region
        $region49: #{tpu_custom_call.1} parent=35 // pred_check
          %p312 = pneg %p127
        $region50: #{tpu_custom_call.1} parent=35 // pred_check_branch
          %314 = sbr.rel (%p312) target = $region52
        $region51: #{tpu_custom_call.1} parent=35 // pred_region
          %315 = dma.done [#allocation9], 256
        $region52: #{tpu_custom_call.1} parent=35 // pred_fallthru
          _
        %s316 = sand.u32 %s51, 1
        %s317 = scalar_lea.sflag [#allocation3], %s316
        %s318 = sand.u32 %s51, 1
        %s319 = smul.addr %s318, 8
        %s320 = scalar_lea.vmem [#allocation2], %s319
        %p321 = pneg %p64
        %p322 = pneg %p61
        %p323 = pneg %p85
        %p324 = pneg %p82
        %p325 = pneg %p106
        %p326 = pneg %p103
        %p327 = pneg %p127
        %p328 = pneg %p124
        %p329 = pneg %p155
        %p330 = pneg %p152
        %s331 = sand.u32 %s142, 1
        %s332 = scalar_lea.sflag [#allocation4], %s331
        %s333 = sand.u32 %s142, 1
        %s334 = smul.addr %s333, 4
        %s335 = scalar_lea.vmem [#allocation10], %s334
        %p336 = pneg %p183
        %p337 = pneg %p180
        %s338 = sand.u32 %s29, 1
        %s339 = scalar_lea.sflag [#allocation12], %s338
        %s340 = sand.u32 %s170, 1
        %s341 = smul.addr %s340, 4
        %s342 = scalar_lea.vmem [#allocation11], %s341
        %p343 = pneg %p211
        %p344 = pneg %p208
        %s345 = sand.u32 %s29, 1
        %s346 = scalar_lea.sflag [#allocation12], %s345
        %s347 = sand.u32 %s198, 1
        %s348 = smul.addr %s347, 4
        %s349 = scalar_lea.vmem [#allocation13], %s348
        %v351 = vld [vmem:[%s299] sm:$0xff]
        %vm352 = vcmask 261120
        %v353 = vsel %vm352, %v351, 0.0
        %354 = vadd.xlane.f32.xlu0 %v353
        %v355 = vpop.xlane.xlu0 %354
        %v356 = vrcp.pop 32.0
        %v357 = vmul.f32 %v355, %v356
        %v358 = vsub.f32 %v351, %v357
        %v359 = vmul.f32 %v358, %v358
        %v360 = vsel %vm352, %v359, 0.0
        %361 = vadd.xlane.f32.xlu0 %v360
        %v362 = vpop.xlane.xlu0 %361
        %v363 = vmul.f32 %v362, %v356
        %v364 = vadd.f32 %v363, 0.0001
        %v365 = vrsqrt.pop %v364
        %v366 = vmul.f32 %v358, %v365
        %v367 = vpack.c.bf16 %v366, %v366
        %v368 = vld [vmem:[#allocation5] sm:$0xf]
        %v369 = vld [vmem:[#allocation5 + $0x4] sm:$0xf]
        %v370 = vld [vmem:[#allocation5 + $0x8] sm:$0xf]
        %v371 = vld [vmem:[#allocation5 + $0xc] sm:$0xf]
        %v376 = vunpack.c.l.b16 %v368
        %v377 = vunpack.c.l.b16 %v369
        %v378 = vunpack.c.l.b16 %v370
        %v379 = vunpack.c.l.b16 %v371
        %v380 = vpack.c.b16 %v377, %v376
        %v381 = vpack.c.b16 %v379, %v378
        %v385 = vsel %vm352, %v367, 0
        %387 = vmatprep.subr.bf16.mxu0 0
        %388 = vmatpush1.bf16.msra.mxu0 %v380
        %389 = vmatprep.subr.bf16.mxu0 0
        %390 = vmatpush1.bf16.msra.mxu0 %v381
        %391 = vmatprep.subr.bf16.mxu0 0
        %392 = vmatpush1.bf16.msra.mxu0 0
        %393 = vmatprep.subr.bf16.mxu0 0
        %394 = vmatpush1.bf16.msra.mxu0 0
        %395 = vmatprep.subr.bf16.mxu0 0
        %396 = vmatpush1.bf16.msra.mxu0 0
        %397 = vmatprep.subr.bf16.mxu0 0
        %398 = vmatpush1.bf16.msra.mxu0 0
        %399 = vmatprep.subr.bf16.mxu0 0
        %400 = vmatpush1.bf16.msra.mxu0 0
        %401 = vmatprep.subr.bf16.mxu0 0
        %402 = vmatpush1.bf16.msra.mxu0 0
        %403 = vmatprep.subr.bf16.mxu0 0
        %404 = vmatpush1.bf16.msra.mxu0 0
        %405 = vmatprep.subr.bf16.mxu0 0
        %406 = vmatpush1.bf16.msra.mxu0 0
        %407 = vmatprep.subr.bf16.mxu0 0
        %408 = vmatpush1.bf16.msra.mxu0 0
        %409 = vmatprep.subr.bf16.mxu0 0
        %410 = vmatpush1.bf16.msra.mxu0 0
        %411 = vmatprep.subr.bf16.mxu0 0
        %412 = vmatpush1.bf16.msra.mxu0 0
        %413 = vmatprep.subr.bf16.mxu0 0
        %414 = vmatpush1.bf16.msra.mxu0 0
        %415 = vmatprep.subr.bf16.mxu0 0
        %416 = vmatpush1.bf16.msra.mxu0 0
        %417 = vmatprep.subr.bf16.mxu0 0
        %418 = vmatpush1.bf16.msra.mxu0 0
        %419 = vmatprep.mubr.bf16.mxu0 0
        %420 = vmatmul.mubr.bf16.gmra.mrb[0].mxu0 %v385
        %v421 = vpop.f32.mrb[0].mxu0
        %v422 = vadd.f32 0.0, %v421
        %v423 = vpop.f32.mrb[0].mxu0
        %v424 = vpop.f32.mrb[0].mxu0
        %v425 = vpop.f32.mrb[0].mxu0
        %426 = vdwg.mxu0
        %v427 = vmul.f32 %v422, 0.35355338
        %v428 = vld [vmem:[#allocation7] sm:$0xf]
        %v429 = vld [vmem:[#allocation7 + $0x4] sm:$0xf]
        %v430 = vld [vmem:[#allocation7 + $0x8] sm:$0xf]
        %v431 = vld [vmem:[#allocation7 + $0xc] sm:$0xf]
        %v436 = vunpack.c.l.b16 %v428
        %v437 = vunpack.c.l.b16 %v429
        %v438 = vunpack.c.l.b16 %v430
        %v439 = vunpack.c.l.b16 %v431
        %v440 = vpack.c.b16 %v437, %v436
        %v441 = vpack.c.b16 %v439, %v438
        %444 = vmatprep.subr.bf16.mxu0 0
        %445 = vmatpush1.bf16.msra.mxu0 %v440
        %446 = vmatprep.subr.bf16.mxu0 0
        %447 = vmatpush1.bf16.msra.mxu0 %v441
        %448 = vmatprep.subr.bf16.mxu0 0
        %449 = vmatpush1.bf16.msra.mxu0 0
        %450 = vmatprep.subr.bf16.mxu0 0
        %451 = vmatpush1.bf16.msra.mxu0 0
        %452 = vmatprep.subr.bf16.mxu0 0
        %453 = vmatpush1.bf16.msra.mxu0 0
        %454 = vmatprep.subr.bf16.mxu0 0
        %455 = vmatpush1.bf16.msra.mxu0 0
        %456 = vmatprep.subr.bf16.mxu0 0
        %457 = vmatpush1.bf16.msra.mxu0 0
        %458 = vmatprep.subr.bf16.mxu0 0
        %459 = vmatpush1.bf16.msra.mxu0 0
        %460 = vmatprep.subr.bf16.mxu0 0
        %461 = vmatpush1.bf16.msra.mxu0 0
        %462 = vmatprep.subr.bf16.mxu0 0
        %463 = vmatpush1.bf16.msra.mxu0 0
        %464 = vmatprep.subr.bf16.mxu0 0
        %465 = vmatpush1.bf16.msra.mxu0 0
        %466 = vmatprep.subr.bf16.mxu0 0
        %467 = vmatpush1.bf16.msra.mxu0 0
        %468 = vmatprep.subr.bf16.mxu0 0
        %469 = vmatpush1.bf16.msra.mxu0 0
        %470 = vmatprep.subr.bf16.mxu0 0
        %471 = vmatpush1.bf16.msra.mxu0 0
        %472 = vmatprep.subr.bf16.mxu0 0
        %473 = vmatpush1.bf16.msra.mxu0 0
        %474 = vmatprep.subr.bf16.mxu0 0
        %475 = vmatpush1.bf16.msra.mxu0 0
        %476 = vmatprep.mubr.bf16.mxu0 0
        %477 = vmatmul.mubr.bf16.gmra.mrb[0].mxu0 %v385
        %v478 = vpop.f32.mrb[0].mxu0
        %v479 = vadd.f32 0.0, %v478
        %v480 = vpop.f32.mrb[0].mxu0
        %v481 = vpop.f32.mrb[0].mxu0
        %v482 = vpop.f32.mrb[0].mxu0
        %483 = vdwg.mxu0
        %v484 = vld [vmem:[#allocation8] sm:$0xf]
        %v485 = vld [vmem:[#allocation8 + $0x4] sm:$0xf]
        %v486 = vld [vmem:[#allocation8 + $0x8] sm:$0xf]
        %v487 = vld [vmem:[#allocation8 + $0xc] sm:$0xf]
        %v492 = vunpack.c.l.b16 %v484
        %v493 = vunpack.c.l.b16 %v485
        %v494 = vunpack.c.l.b16 %v486
        %v495 = vunpack.c.l.b16 %v487
        %v496 = vpack.c.b16 %v493, %v492
        %v497 = vpack.c.b16 %v495, %v494
        %500 = vmatprep.subr.bf16.mxu0 0
        %501 = vmatpush1.bf16.msra.mxu0 %v496
        %502 = vmatprep.subr.bf16.mxu0 0
        %503 = vmatpush1.bf16.msra.mxu0 %v497
        %504 = vmatprep.subr.bf16.mxu0 0
        %505 = vmatpush1.bf16.msra.mxu0 0
        %506 = vmatprep.subr.bf16.mxu0 0
        %507 = vmatpush1.bf16.msra.mxu0 0
        %508 = vmatprep.subr.bf16.mxu0 0
        %509 = vmatpush1.bf16.msra.mxu0 0
        %510 = vmatprep.subr.bf16.mxu0 0
        %511 = vmatpush1.bf16.msra.mxu0 0
        %512 = vmatprep.subr.bf16.mxu0 0
        %513 = vmatpush1.bf16.msra.mxu0 0
        %514 = vmatprep.subr.bf16.mxu0 0
        %515 = vmatpush1.bf16.msra.mxu0 0
        %516 = vmatprep.subr.bf16.mxu0 0
        %517 = vmatpush1.bf16.msra.mxu0 0
        %518 = vmatprep.subr.bf16.mxu0 0
        %519 = vmatpush1.bf16.msra.mxu0 0
        %520 = vmatprep.subr.bf16.mxu0 0
        %521 = vmatpush1.bf16.msra.mxu0 0
        %522 = vmatprep.subr.bf16.mxu0 0
        %523 = vmatpush1.bf16.msra.mxu0 0
        %524 = vmatprep.subr.bf16.mxu0 0
        %525 = vmatpush1.bf16.msra.mxu0 0
        %526 = vmatprep.subr.bf16.mxu0 0
        %527 = vmatpush1.bf16.msra.mxu0 0
        %528 = vmatprep.subr.bf16.mxu0 0
        %529 = vmatpush1.bf16.msra.mxu0 0
        %530 = vmatprep.subr.bf16.mxu0 0
        %531 = vmatpush1.bf16.msra.mxu0 0
        %532 = vmatprep.mubr.bf16.mxu0 0
        %533 = vmatmul.mubr.bf16.gmra.mrb[0].mxu0 %v385
        %v534 = vpop.f32.mrb[0].mxu0
        %v535 = vadd.f32 0.0, %v534
        %v536 = vpop.f32.mrb[0].mxu0
        %v537 = vpop.f32.mrb[0].mxu0
        %v538 = vpop.f32.mrb[0].mxu0
        %539 = vdwg.mxu0
        %v540 = vpack.c.bf16 %v427, %v427
        %vm541 = vcmask 257024
        %542 = vst.msk [vmem:[%s335] sm:$0xf] %vm541, %v540
        %v543 = vpack.c.bf16 %v479, %v479
        %544 = vst.msk [vmem:[%s342] sm:$0xf] %vm541, %v543
        %v545 = vpack.c.bf16 %v535, %v535
        %546 = vst.msk [vmem:[%s349] sm:$0xf] %vm541, %v545
        %s547 = sand.u32 %s142, 1
        %s548 = scalar_lea.sflag [#allocation4], %s547
        %s549 = sand.u32 %s142, 1
        %s550 = smul.addr %s549, 4
        %s551 = scalar_lea.vmem [#allocation10], %s550
        %s552 = sand.u32 %s29, 1
        %s553 = scalar_lea.sflag [#allocation12], %s552
        %s554 = sand.u32 %s170, 1
        %s555 = smul.addr %s554, 4
        %s556 = scalar_lea.vmem [#allocation11], %s555
        %s557 = sand.u32 %s29, 1
        %s558 = scalar_lea.sflag [#allocation12], %s557
        %s559 = sand.u32 %s198, 1
        %s560 = smul.addr %s559, 4
        %s561 = scalar_lea.vmem [#allocation13], %s560
        // Predicated region
        $region53: #{tpu_custom_call.1} parent=35 // pred_check
          %p562 = pneg %p152
        $region54: #{tpu_custom_call.1} parent=35 // pred_check_branch
          %564 = sbr.rel (%p562) target = $region56
        $region55: #{tpu_custom_call.1} parent=35 // pred_region
          %s566 = ssub.s32 64, 64
          %567 = vsyncadd %s548, %s566
          %s568 = sadd.s32 %s34, %s33
          %s569 = smul.addr %s568, 64
          %s570 = scalar_lea.hbm %s4, %s569
          %s572 = sshll.u32 %s551, 4
          %s573 = int_to_ptr.vmem [resolvable:$true] %s572
          %575 = dma.vmem_to_hbm [thread:$0]  %s573, 64, %s570, %s548
        $region56: #{tpu_custom_call.1} parent=35 // pred_fallthru
          _
        // Predicated region
        $region57: #{tpu_custom_call.1} parent=35 // pred_check
          %p576 = pneg %p180
        $region58: #{tpu_custom_call.1} parent=35 // pred_check_branch
          %578 = sbr.rel (%p576) target = $region60
        $region59: #{tpu_custom_call.1} parent=35 // pred_region
          %s580 = ssub.s32 64, 64
          %581 = vsyncadd %s553, %s580
          %s582 = sadd.s32 %s34, %s33
          %s583 = smul.addr %s582, 64
          %s584 = scalar_lea.hbm %s5, %s583
          %s586 = sshll.u32 %s556, 4
          %s587 = int_to_ptr.vmem [resolvable:$true] %s586
          %589 = dma.vmem_to_hbm [thread:$0]  %s587, 64, %s584, %s553
        $region60: #{tpu_custom_call.1} parent=35 // pred_fallthru
          _
        // Predicated region
        $region61: #{tpu_custom_call.1} parent=35 // pred_check
          %p590 = pneg %p208
        $region62: #{tpu_custom_call.1} parent=35 // pred_check_branch
          %592 = sbr.rel (%p590) target = $region64
        $region63: #{tpu_custom_call.1} parent=35 // pred_region
          %s594 = ssub.s32 64, 64
          %595 = vsyncadd %s558, %s594
          %s596 = sadd.s32 %s34, %s33
          %s597 = smul.addr %s596, 64
          %s598 = scalar_lea.hbm %s6, %s597
          %s600 = sshll.u32 %s561, 4
          %s601 = int_to_ptr.vmem [resolvable:$true] %s600
          %603 = dma.vmem_to_hbm [thread:$0]  %s601, 64, %s598, %s558
        $region64: #{tpu_custom_call.1} parent=35 // pred_fallthru
          _
      $region36: #{tpu_custom_call.1} parent=5 // pred_fallthru
        _
      %p604 = scmp.le.s32.totalorder 2, %s24
      // Predicated region
      $region65: #{tpu_custom_call.1} parent=5 // pred_check
        %p605 = pneg %p604
      $region66: #{tpu_custom_call.1} parent=5 // pred_check_branch
        %607 = sbr.rel (%p605) target = $region68
      $region67: #{tpu_custom_call.1} parent=5 // pred_region
        %s608 = ssub.s32 %s24, 2
        // Predicated region
        $region69: #{tpu_custom_call.1} parent=67 // pred_check
          %p609 = pneg %p158
        $region70: #{tpu_custom_call.1} parent=67 // pred_check_branch
          %611 = sbr.rel (%p609) target = $region72
        $region71: #{tpu_custom_call.1} parent=67 // pred_region
          %s612 = sand.u32 %s143, 1
          %s613 = scalar_lea.sflag [#allocation4], %s612
          %s614 = sand.u32 %s143, 1
          %s615 = smul.addr %s614, 4
          %s616 = scalar_lea.vmem [#allocation10], %s615
          %617 = dma.done %s613, 64
        $region72: #{tpu_custom_call.1} parent=67 // pred_fallthru
          _
        // Predicated region
        $region73: #{tpu_custom_call.1} parent=67 // pred_check
          %p618 = pneg %p186
        $region74: #{tpu_custom_call.1} parent=67 // pred_check_branch
          %620 = sbr.rel (%p618) target = $region76
        $region75: #{tpu_custom_call.1} parent=67 // pred_region
          %s621 = sand.u32 %s30, 1
          %s622 = scalar_lea.sflag [#allocation12], %s621
          %s623 = sand.u32 %s171, 1
          %s624 = smul.addr %s623, 4
          %s625 = scalar_lea.vmem [#allocation11], %s624
          %626 = dma.done %s622, 64
        $region76: #{tpu_custom_call.1} parent=67 // pred_fallthru
          _
        // Predicated region
        $region77: #{tpu_custom_call.1} parent=67 // pred_check
          %p627 = pneg %p214
        $region78: #{tpu_custom_call.1} parent=67 // pred_check_branch
          %629 = sbr.rel (%p627) target = $region80
        $region79: #{tpu_custom_call.1} parent=67 // pred_region
          %s630 = sand.u32 %s30, 1
          %s631 = scalar_lea.sflag [#allocation12], %s630
          %s632 = sand.u32 %s199, 1
          %s633 = smul.addr %s632, 4
          %s634 = scalar_lea.vmem [#allocation13], %s633
          %635 = dma.done %s631, 64
        $region80: #{tpu_custom_call.1} parent=67 // pred_fallthru
          _
      $region68: #{tpu_custom_call.1} parent=5 // pred_fallthru
        _
    $region6: #{tpu_custom_call.1} parent=1 // loop_footer
      %s28 = sadd.s32 1, %s24
    $region7: #{tpu_custom_call.1} parent=1 // loop_footer_branch
      %23 = sbr.rel target = $region3
    $region8: #{tpu_custom_call.1} parent=1 // loop_exit
      _
    %636 = vsyncpa [#allocation3], 1
    %s637 = scalar_lea.sflag [#allocation3], 1
    %638 = vsyncpa %s637, 1
    %639 = vsyncpa [#allocation6], 1
    %640 = vsyncpa [#allocation9], 1
    %641 = vsyncpa [#allocation4], 1
    %s642 = scalar_lea.sflag [#allocation4], 1
    %643 = vsyncpa %s642, 1
    %644 = vsyncpa [#allocation12], 1
    %s645 = scalar_lea.sflag [#allocation12], 1
    %646 = vsyncpa %s645, 1

</llo_original>
